<compile_context>
chip_gen: v6e
topology: v6e:2x2x1
jax: 0.10.0
libtpu: 0.0.40
codegen_flags: <defaults>
</compile_context>

<pallas_src>
import functools

import jax
import jax.numpy as jnp
from jax.experimental import pallas as pl
from jax.experimental.pallas import tpu as pltpu

_LANE = 128


def _safety_filter_kernel(*refs, smoothing: float, yaw_lo: float, yaw_hi: float,
                          action_dim: int, apply_state_constraint: bool):
    """Elementwise safety filter on a 2-D tile.

    Handles both layouts with the same body:
      * lane-fold path: tile is (rows, 128), channel id == lane % action_dim
      * whole-array path: tile is (B, action_dim), channel id == lane index
    (covered uniformly by iota(axis=1) % action_dim).
    """
    if apply_state_constraint:
        action_ref, prev_ref, alt_ref, out_ref = refs
    else:
        action_ref, prev_ref, out_ref = refs
        alt_ref = None

    a = action_ref[...].astype(jnp.float32)
    prev = prev_ref[...].astype(jnp.float32)

    # (1, lanes) channel ids; broadcasting in the selects keeps per-tile
    # constant materialization and VALU work small.
    chan = jax.lax.broadcasted_iota(jnp.int32, (1, a.shape[1]), 1) % action_dim

    # Per-channel clamp: chans 0..2 -> [-1, 1]; chan 3 -> yaw bounds;
    # chans >= 4 pass through (static conditions — no dead code emitted).
    clamped = jnp.clip(a, -1.0, 1.0)
    if action_dim > 3:
        clamped = jnp.where(chan == 3, jnp.clip(a, yaw_lo, yaw_hi), clamped)
    if action_dim > 4:
        clamped = jnp.where(chan >= 4, a, clamped)

    # Temporal smoothing.
    smoothed = smoothing * prev + (1.0 - smoothing) * clamped

    # Low-altitude constraint on channel 2 only.
    if apply_state_constraint:
        low_alt = alt_ref[...].astype(jnp.float32) < 5.0
        mask = jnp.logical_and(low_alt, chan == 2)
        smoothed = jnp.where(mask, jnp.clip(smoothed, -0.5, 0.5), smoothed)

    out_ref[...] = smoothed.astype(out_ref.dtype)


def safety_filter_forward(action, state, prev_action, limits, smoothing=0.9):
    """JAX/Pallas equivalent of SafetyFilter.forward.

    Returns the safe action in `action.dtype`.  The caller threads it back as
    the next step's prev_action to mimic the PyTorch buffer semantics.
    """
    B, A = action.shape
    vel = float(limits["velocity"])
    ang = float(limits["angular_velocity"])
    apply_state_constraint = state.shape[1] > 2
    out_dtype = action.dtype

    kernel = functools.partial(
        _safety_filter_kernel,
        smoothing=float(smoothing),
        yaw_lo=-ang / vel,
        yaw_hi=ang / vel,
        action_dim=A,
        apply_state_constraint=apply_state_constraint,
    )

    lane_batch = _LANE // A if _LANE % A == 0 else 0
    row_quantum = 8 * lane_batch          # batch granularity of one (8,128) tile

    # ---- small / generic path: whole arrays as single VMEM blocks (no grid,
    # no padding, no layout ops).  Also used when A doesn't divide 128 — fine
    # for the small control tensors this module sees.
    if lane_batch == 0 or B < row_quantum:
        inputs = [action, prev_action]
        if apply_state_constraint:
            inputs.append(state[:, 2:3])  # (B, 1) altitude; broadcasts in-kernel
        return pl.pallas_call(
            kernel,
            out_shape=jax.ShapeDtypeStruct((B, A), out_dtype),
        )(*inputs)

    # ---- lane-fold path: fold the action dim into lanes with a free row-major
    # reshape (B, A) -> (R, 128).  Batch padded only to row_quantum (the pad is
    # a contiguous stream copy and skipped entirely for aligned B); grid sized
    # with cdiv so no work is rounded up to the block size.
    B_pad = pl.cdiv(B, row_quantum) * row_quantum
    pad = B_pad - B
    R = B_pad // lane_batch               # rows of 128 lanes, multiple of 8

    # ~1 MiB per f32 operand per grid step; large batches still get many grid
    # steps on the "parallel" axis (v7x megacore) and double-buffered VMEM use
    # stays a few MiB.
    tile_r = min(2048, R)
    grid = (pl.cdiv(R, tile_r),)

    def fold(x):
        if pad:
            x = jnp.pad(x, ((0, pad), (0, 0)))
        return x.reshape(R, _LANE)        # metadata-only reshape, no transpose

    spec = pl.BlockSpec((tile_r, _LANE), lambda i: (i, 0))
    inputs = [fold(action), fold(prev_action)]
    in_specs = [spec, spec]
    if apply_state_constraint:
        # Altitude broadcast to (B, A) then folded so it shares the lane layout.
        # Padded rows see altitude 0 (< 5) and take the low-altitude clamp, but
        # they are sliced off below, so this is harmless.
        alt = jnp.broadcast_to(state[:, 2:3], (B, A))
        inputs.append(fold(alt))
        in_specs.append(spec)

    out = pl.pallas_call(
        kernel,
        out_shape=jax.ShapeDtypeStruct((R, _LANE), out_dtype),
        grid=grid,
        in_specs=in_specs,
        out_specs=spec,
        compiler_params=pltpu.CompilerParams(
            dimension_semantics=("parallel",)),
    )(*inputs)

    return out.reshape(B_pad, A)[:B]


def _reference(action, state, prev_action, limits, smoothing=0.9):
    """Pure-JAX reference mirroring the PyTorch forward, for validation."""
    B, A = action.shape
    vel = float(limits["velocity"])
    ang = float(limits["angular_velocity"])
    bounds = [(-vel, vel), (-vel, vel), (-vel, vel), (-ang, ang)]
    safe = action
    for idx, (mn, mx) in enumerate(bounds):
        if idx < A:
            safe = safe.at[:, idx].set(jnp.clip(action[:, idx], mn / vel, mx / vel))
    safe = smoothing * prev_action + (1.0 - smoothing) * safe
    if state.shape[1] > 2:
        low = state[:, 2] < 5.0
        safe = safe.at[:, 2].set(
            jnp.where(low, jnp.clip(safe[:, 2], -0.5, 0.5), safe[:, 2]))
    return safe


if __name__ == "__main__":
    key = jax.random.PRNGKey(0)

    ACTION_DIM = 4     # velocity_x, velocity_y, velocity_z, yaw_rate
    STATE_DIM = 12     # > 2 so the altitude constraint is exercised
    limits = {"velocity": 2.0, "angular_velocity": 1.0}
    smoothing = 0.9

    # B=8   -> small fast path (single whole-array VMEM block, no padding)
    # B=300 -> lane-fold tiled path (exercises padding to row_quantum + grid)
    for B in (8, 300):
        k1, k2, k3 = jax.random.split(jax.random.fold_in(key, B), 3)
        # Actions scaled so some values exceed the clamp range; altitudes span
        # both sides of 5.0; nonzero prev_action exercises the smoothing term.
        action = (3.0 * jax.random.normal(k1, (B, ACTION_DIM))).astype(jnp.float32)
        state = (10.0 * jax.random.uniform(k2, (B, STATE_DIM))).astype(jnp.float32)
        prev_action = (0.5 * jax.random.normal(k3, (B, ACTION_DIM))).astype(jnp.float32)

        out = jax.block_until_ready(
            safety_filter_forward(action, state, prev_action, limits, smoothing))
        ref = _reference(action, state, prev_action, limits, smoothing)

        assert out.shape == (B, ACTION_DIM)
        assert out.dtype == action.dtype
        assert jnp.allclose(out, ref, atol=1e-6), (B, out, ref)

    print("KERNEL_OK")
</pallas_src>

<mosaic_0001>
module attributes {stable_mosaic.version = 11 : i64} {
  func.func @_safety_filter_kernel(%arg0: memref<8x4xf32, #tpu.memory_space<vmem>>, %arg1: memref<8x4xf32, #tpu.memory_space<vmem>>, %arg2: memref<8x1xf32, #tpu.memory_space<vmem>>, %arg3: memref<8x4xf32, #tpu.memory_space<vmem>>) attributes {dimension_semantics = [], scalar_prefetch = 0 : i64, scratch_operands = 0 : i64, tpu.core_type = #tpu.core_type<tc>} {
    %c0 = arith.constant 0 : index
    %c0_0 = arith.constant 0 : index
    %0 = vector.load %arg0[%c0, %c0_0] : memref<8x4xf32, #tpu.memory_space<vmem>>, vector<8x4xf32>
    %c0_1 = arith.constant 0 : index
    %c0_2 = arith.constant 0 : index
    %1 = vector.load %arg1[%c0_1, %c0_2] : memref<8x4xf32, #tpu.memory_space<vmem>>, vector<8x4xf32>
    %2 = tpu.iota {dimensions = array<i32: 1>} : vector<1x4xi32>
    %c4_i32 = arith.constant 4 : i32
    %c0_i32 = arith.constant 0 : i32
    %3 = arith.cmpi eq, %c4_i32, %c0_i32 : i32
    %c1_i32 = arith.constant 1 : i32
    %4 = arith.select %3, %c1_i32, %c4_i32 : i32
    %5 = vector.broadcast %4 : i32 to vector<1x4xi32>
    %6 = arith.remsi %2, %5 : vector<1x4xi32>
    %c0_i32_3 = arith.constant 0 : i32
    %7 = vector.broadcast %c0_i32_3 : i32 to vector<1x4xi32>
    %8 = arith.cmpi ne, %6, %7 : vector<1x4xi32>
    %c0_i32_4 = arith.constant 0 : i32
    %9 = vector.broadcast %c0_i32_4 : i32 to vector<1x4xi32>
    %10 = arith.cmpi slt, %6, %9 : vector<1x4xi32>
    %c0_i32_5 = arith.constant 0 : i32
    %11 = arith.cmpi slt, %4, %c0_i32_5 : i32
    %12 = vector.broadcast %11 : i1 to vector<1x4xi1>
    %13 = vector.broadcast %12 : vector<1x4xi1> to vector<1x4xi1>
    %14 = arith.xori %10, %13 : vector<1x4xi1>
    %15 = arith.andi %14, %8 : vector<1x4xi1>
    %16 = vector.broadcast %4 : i32 to vector<1x4xi32>
    %17 = arith.addi %6, %16 : vector<1x4xi32>
    %18 = arith.select %15, %17, %6 : vector<1x4xi1>, vector<1x4xi32>
    %cst = arith.constant -1.000000e+00 : f32
    %cst_6 = arith.constant 1.000000e+00 : f32
    %19 = vector.broadcast %cst : f32 to vector<8x4xf32>
    %20 = arith.maximumf %19, %0 : vector<8x4xf32>
    %21 = vector.broadcast %cst_6 : f32 to vector<8x4xf32>
    %22 = arith.minimumf %21, %20 : vector<8x4xf32>
    %c3_i32 = arith.constant 3 : i32
    %23 = vector.broadcast %c3_i32 : i32 to vector<1x4xi32>
    %24 = arith.cmpi eq, %18, %23 : vector<1x4xi32>
    %cst_7 = arith.constant -5.000000e-01 : f32
    %cst_8 = arith.constant 5.000000e-01 : f32
    %25 = vector.broadcast %cst_7 : f32 to vector<8x4xf32>
    %26 = arith.maximumf %25, %0 : vector<8x4xf32>
    %27 = vector.broadcast %cst_8 : f32 to vector<8x4xf32>
    %28 = arith.minimumf %27, %26 : vector<8x4xf32>
    %29 = vector.shape_cast %24 : vector<1x4xi1> to vector<1x4xi1>
    %30 = vector.broadcast %29 : vector<1x4xi1> to vector<8x4xi1>
    %31 = arith.select %30, %28, %22 : vector<8x4xi1>, vector<8x4xf32>
    %cst_9 = arith.constant 0.899999976 : f32
    %32 = vector.broadcast %cst_9 : f32 to vector<8x4xf32>
    %33 = arith.mulf %32, %1 : vector<8x4xf32>
    %cst_10 = arith.constant 1.000000e-01 : f32
    %34 = vector.broadcast %cst_10 : f32 to vector<8x4xf32>
    %35 = arith.mulf %34, %31 : vector<8x4xf32>
    %36 = arith.addf %33, %35 : vector<8x4xf32>
    %c0_11 = arith.constant 0 : index
    %c0_12 = arith.constant 0 : index
    %37 = vector.load %arg2[%c0_11, %c0_12] : memref<8x1xf32, #tpu.memory_space<vmem>>, vector<8x1xf32>
    %cst_13 = arith.constant 5.000000e+00 : f32
    %38 = vector.broadcast %cst_13 : f32 to vector<8x1xf32>
    %39 = arith.cmpf olt, %37, %38 : vector<8x1xf32>
    %c2_i32 = arith.constant 2 : i32
    %40 = vector.broadcast %c2_i32 : i32 to vector<1x4xi32>
    %41 = arith.cmpi eq, %18, %40 : vector<1x4xi32>
    %42 = vector.broadcast %39 : vector<8x1xi1> to vector<8x4xi1>
    %43 = vector.broadcast %41 : vector<1x4xi1> to vector<8x4xi1>
    %44 = arith.andi %42, %43 : vector<8x4xi1>
    %cst_14 = arith.constant -5.000000e-01 : f32
    %cst_15 = arith.constant 5.000000e-01 : f32
    %45 = vector.broadcast %cst_14 : f32 to vector<8x4xf32>
    %46 = arith.maximumf %45, %36 : vector<8x4xf32>
    %47 = vector.broadcast %cst_15 : f32 to vector<8x4xf32>
    %48 = arith.minimumf %47, %46 : vector<8x4xf32>
    %49 = arith.select %44, %48, %36 : vector<8x4xi1>, vector<8x4xf32>
    %c0_16 = arith.constant 0 : index
    %c0_17 = arith.constant 0 : index
    %50 = vector.load %arg3[%c0_16, %c0_17] : memref<8x4xf32, #tpu.memory_space<vmem>>, vector<8x4xf32>
    tpu.vector_store %arg3[%c0_16, %c0_17], %49 {strides = array<i32>} : memref<8x4xf32, #tpu.memory_space<vmem>>, vector<8x4xf32>,
    return
  }
}

</mosaic_0001>

<llo_original>
// kernel: tpu_custom_call.1
$region0: #{tpu_custom_call.1}
  #allocation0 [shape = 'u32[]', space=smem, size = 0x4, offset = 0x4, fixed_abs, tag = 'smem constant byte address 0x4 - core index']
  #allocation1 [shape = 'u32[144,128]{1,0:T(1,128)}', space=vmem, size = 0x12000, scoped, tag = 'internal scratch']
  %s0 = inlined_call_operand.vmem [shape: f32[8,4], index: 0, kind: input, shape index: {}]
  %s1 = inlined_call_operand.vmem [shape: f32[8,4], index: 1, kind: input, shape index: {}]
  %s2 = inlined_call_operand.vmem [shape: f32[8,1], index: 2, kind: input, shape index: {}]
  %s3 = inlined_call_operand.vmem [shape: f32[8,4], index: 3, kind: output, shape index: {}]
  %s4 = sld [smem:[#allocation0]]
  $region22: #{tpu_custom_call.1} parent=0
    _
  %s6 = ssub.s32 1, %s4
  %s7 = scalar_select 0, %s6, %s4
  // Predicated region
  $region2: #{tpu_custom_call.1} parent=0 // pred_check
    _
  $region3: #{tpu_custom_call.1} parent=0 // pred_check_branch
    %9 = sbr.rel (0) target = $region5
  $region4: #{tpu_custom_call.1} parent=0 // pred_region
    _
  $region5: #{tpu_custom_call.1} parent=0 // pred_fallthru
    _
  // Predicated region
  $region6: #{tpu_custom_call.1} parent=0 // pred_check
    _
  $region7: #{tpu_custom_call.1} parent=0 // pred_check_branch
    %11 = sbr.rel (0) target = $region9
  $region8: #{tpu_custom_call.1} parent=0 // pred_region
    _
  $region9: #{tpu_custom_call.1} parent=0 // pred_fallthru
    _
  // Predicated region
  $region10: #{tpu_custom_call.1} parent=0 // pred_check
    _
  $region11: #{tpu_custom_call.1} parent=0 // pred_check_branch
    %13 = sbr.rel (0) target = $region13
  $region12: #{tpu_custom_call.1} parent=0 // pred_region
    _
  $region13: #{tpu_custom_call.1} parent=0 // pred_fallthru
    _
  %v14 = vld [vmem:[%s0] sm:$0xff]
  %v15 = vld [vmem:[%s1] sm:$0xff]
  %v16 = vlaneseq
  %v17 = vand.u32 %v16, 127
  %vm18 = vcmp.lt.s32.totalorder %v17, 0
  %v19 = vsub.s32 0, %v17
  %v20 = vsel %vm18, %v19, %v17
  %v21 = vshrl.u32 %v20, 2
  %v22 = vand.u32 %v20, 3
  %v23 = vsub.s32 0, %v22
  %v24 = vsel %vm18, %v23, %v22
  %vm25 = vcmp.ne.s32.totalorder %v24, 0
  %vm26 = vcmp.lt.s32.totalorder %v24, 0
  %vm27 = vmand %vm26, %vm25
  %v28 = vadd.s32 %v24, 4
  %v29 = vsel %vm27, %v28, %v24
  %v30 = vmax.f32 %v14, -1.0
  %v31 = vmin.f32 %v30, 1.0
  %vm32 = vcmp.eq.s32.totalorder %v29, 3
  %v33 = vmax.f32 %v14, -0.5
  %v34 = vmin.f32 %v33, 0.5
  %v35 = vsel %vm32, 1, 0
  %vm36 = vcmp.eq.s32.totalorder %v35, 1
  %v37 = vsel %vm36, %v34, %v31
  %v38 = vmul.f32 %v15, 0.9
  %v39 = vmul.f32 %v37, 0.1
  %v40 = vadd.f32 %v38, %v39
  %v41 = vld [vmem:[%s2] sm:$0xff]
  %vm42 = vcmp.lt.f32.partialorder %v41, 5.0
  %vm43 = vcmp.eq.s32.totalorder %v29, 2
  %v44 = vsel %vm42, 1, 0
  %45 = vset.pattern.permute.xlu0 0
  %46 = vperm.xlu0 %45, %v44
  %v47 = vpop.permute.xlu0 %46
  %vm48 = vcmp.eq.s32.totalorder %v47, 1
  %v49 = vsel %vm43, 1, 0
  %vm50 = vcmp.eq.s32.totalorder %v49, 1
  %vm51 = vmand %vm48, %vm50
  %v52 = vmax.f32 %v40, -0.5
  %v53 = vmin.f32 %v52, 0.5
  %v54 = vsel %vm51, %v53, %v40
  %vm55 = vcmask 31744
  %56 = vst.msk [vmem:[%s3] sm:$0xff] %vm55, %v54
  // Predicated region
  $region14: #{tpu_custom_call.1} parent=0 // pred_check
    _
  $region15: #{tpu_custom_call.1} parent=0 // pred_check_branch
    %58 = sbr.rel (0) target = $region17
  $region16: #{tpu_custom_call.1} parent=0 // pred_region
    _
  $region17: #{tpu_custom_call.1} parent=0 // pred_fallthru
    _
  // Predicated region
  $region18: #{tpu_custom_call.1} parent=0 // pred_check
    _
  $region19: #{tpu_custom_call.1} parent=0 // pred_check_branch
    %60 = sbr.rel (0) target = $region21
  $region20: #{tpu_custom_call.1} parent=0 // pred_region
    _
  $region21: #{tpu_custom_call.1} parent=0 // pred_fallthru
    _

</llo_original>
